<compile_context>
chip_gen: v7x
topology: tpu7x:2x2x1
jax: 0.10.0
libtpu: 0.0.40
codegen_flags: <defaults>
</compile_context>

<pallas_src>
import functools

import jax
import jax.numpy as jnp
from jax import lax
from jax.experimental import pallas as pl
from jax.experimental.pallas import tpu as pltpu


def basic_block_kernel(x_ref, wb1_ref, wb2_ref, b1_ref, b2_ref, o_ref, *, H, R):
    # x_ref  : (B, R, WC) f32   row-padded lane-dense input (rows [0,H) valid, rest 0)
    # wb*_ref: (3, WC, WC) bf16 banded conv weights (kx taps + width pad + BN scale folded)
    # b*_ref : (1, WC) f32      folded BatchNorm bias, tiled along width
    # o_ref  : (B, H, WC) f32
    B = x_ref.shape[0]
    WC = o_ref.shape[-1]
    S = B * R

    x = x_ref[...].reshape(S, WC)            # f32 slab (kept for the residual path)
    xb = x.astype(jnp.bfloat16)              # MXU operands in bf16, f32 accumulate

    def conv3x3(lhs_b16, wb_ref):
        # One full-slab (S, WC) x (WC, WC) matmul per ky tap; ky taps combined with
        # sublane rolls (XLU).  Zero rows between images make the rolled boundary
        # rows read zeros, which is exactly the SAME row padding.
        p0 = jnp.dot(lhs_b16, wb_ref[0], preferred_element_type=jnp.float32)
        acc = jnp.dot(lhs_b16, wb_ref[1], preferred_element_type=jnp.float32)
        p2 = jnp.dot(lhs_b16, wb_ref[2], preferred_element_type=jnp.float32)
        acc = acc + pltpu.roll(p0, 1, 0)         # out[r] += (x @ wb[0])[r - 1]
        acc = acc + pltpu.roll(p2, S - 1, 0)     # out[r] += (x @ wb[2])[r + 1]
        return acc

    # ---- conv1 (BN1 scale pre-folded) + BN1 bias + ReLU (f32 elementwise) ----
    h1 = jnp.maximum(conv3x3(xb, wb1_ref) + b1_ref[...], 0.0)

    # Zero the per-image pad rows so conv2's rolled taps see proper zero padding.
    row_valid = (lax.broadcasted_iota(jnp.int32, (1, R, 1), 1) < H).astype(jnp.float32)
    h1 = (h1.reshape(B, R, WC) * row_valid).reshape(S, WC)

    # ---- conv2 (BN2 scale pre-folded) + BN2 bias + residual (f32) + ReLU ----
    out = jnp.maximum(conv3x3(h1.astype(jnp.bfloat16), wb2_ref) + b2_ref[...] + x, 0.0)

    # Aligned full-block store of the valid image rows (H is a sublane multiple).
    o_ref[...] = out.reshape(B, R, WC)[:, :H, :]


def _banded_conv_weights(w_hwio, out_w, out_scale=None, dtype=jnp.bfloat16):
    """Fold the kx taps (+ width zero padding, + optional per-output-channel scale)
    of a (kh, kw) SAME conv into banded matrices.

    w_hwio: (kh, kw, Cin, Cout) -> (kh, out_w*Cin, out_w*Cout) with
      result[ky, xs*Cin + ci, x*Cout + co] = scale[co] * w[ky, xs - x + kw//2, ci, co]
    (zero off-band), so one row-slab (*, W*Cin) @ result[ky] performs the whole kx
    sweep for that ky tap, including the implicit zero padding along the width.
    """
    kh, kw, cin, cout = w_hwio.shape
    if out_scale is not None:
        w_hwio = w_hwio * out_scale                      # fold BN scale (per Cout)
    xs = jnp.arange(out_w)
    x = jnp.arange(out_w)
    d = jnp.arange(kw)
    band = (xs[None, None, :] ==
            (x[None, :, None] + d[:, None, None] - kw // 2)).astype(w_hwio.dtype)
    wb = jnp.einsum('dxs,ydio->ysixo', band, w_hwio)     # (kh, W, Cin, W, Cout)
    return wb.reshape(kh, out_w * cin, out_w * cout).astype(dtype)


@jax.jit
def basic_block_forward(x_nhwc, w1, w2, s1, b1, s2, b2):
    N, H, W, Cin = x_nhwc.shape
    kh, kw, _, C = w1.shape
    assert Cin == C and (kh, kw) == (3, 3), \
        "BasicBlock kernel supports stride=1, 3x3, in_channels==channels only"
    WC = W * C
    WCin = W * Cin
    # Lane-density premise (still correct otherwise, but that's the fast path).
    # assert WC == 128

    # Rows per image: H image rows + >=1 zero row, rounded up to a sublane multiple,
    # so every row shift stays 8-aligned and image boundaries read zeros.
    R = ((H + 1 + 7) // 8) * 8

    # Batch tile: amortize per-grid-step overhead, keep >=2 parallel grid steps
    # (v7x has 2 TensorCores), cap the block so the VMEM footprint stays small.
    b_tile = max(1, min(64, (N + 1) // 2))
    grid_n = pl.cdiv(N, b_tile)
    Np = grid_n * b_tile

    # Single pad+flatten pass into the lane-dense, row-padded layout (Np, R, W*Cin).
    # TODO(synk): in a full ResNet keep activations in this layout between blocks so
    # this pad/reshape (and the final slice) disappear from HBM traffic entirely.
    x_slab = jnp.zeros((Np, R, WCin), x_nhwc.dtype)
    x_slab = x_slab.at[:N, :H, :].set(x_nhwc.reshape(N, H, WCin))

    # Banded conv weights with BN scale folded in, bf16 for the MXU.
    wb1 = _banded_conv_weights(w1, W, out_scale=s1)      # (3, W*Cin, W*C) bf16
    wb2 = _banded_conv_weights(w2, W, out_scale=s2)      # (3, W*C,   W*C) bf16
    b1f = jnp.tile(b1.reshape(1, C), (1, W)).astype(jnp.float32)   # (1, W*C)
    b2f = jnp.tile(b2.reshape(1, C), (1, W)).astype(jnp.float32)

    kernel = functools.partial(basic_block_kernel, H=H, R=R)

    grid_spec = pltpu.PrefetchScalarGridSpec(
        num_scalar_prefetch=0,
        grid=(grid_n,),
        in_specs=[
            pl.BlockSpec((b_tile, R, WCin), lambda n: (n, 0, 0)),
            pl.BlockSpec((3, WCin, WC), lambda n: (0, 0, 0)),
            pl.BlockSpec((3, WC, WC), lambda n: (0, 0, 0)),
            pl.BlockSpec((1, WC), lambda n: (0, 0)),
            pl.BlockSpec((1, WC), lambda n: (0, 0)),
        ],
        out_specs=pl.BlockSpec((b_tile, H, WC), lambda n: (n, 0, 0)),
    )

    out_flat = pl.pallas_call(
        kernel,
        out_shape=jax.ShapeDtypeStruct((Np, H, WC), jnp.float32),
        grid_spec=grid_spec,
        compiler_params=pltpu.CompilerParams(
            dimension_semantics=("parallel",)),
    )(x_slab, wb1, wb2, b1f, b2f)

    # Lane-dense (Np, H, W*C) kernel output -> NHWC in the wrapper.
    return out_flat[:N].reshape(N, H, W, C)


# ---------------- pure-JAX reference (same math, NHWC) ----------------
def reference_forward(x_nhwc, w1, w2, s1, b1, s2, b2, match_kernel_precision=True):
    """Reference BasicBlock forward.  With match_kernel_precision, the conv operands
    are rounded to bf16 exactly like the kernel's MXU path (f32 accumulation; BN bias,
    residual and ReLU stay f32), so the comparison isolates real bugs from the
    intentional bf16 operand rounding."""
    dn = ("NHWC", "HWIO", "NHWC")
    if match_kernel_precision:
        q = lambda a: a.astype(jnp.bfloat16).astype(jnp.float32)
    else:
        q = lambda a: a
    h = lax.conv_general_dilated(q(x_nhwc), q(w1 * s1), (1, 1), "SAME",
                                 dimension_numbers=dn)
    h = jnp.maximum(h + b1, 0.0)
    out = lax.conv_general_dilated(q(h), q(w2 * s2), (1, 1), "SAME",
                                   dimension_numbers=dn)
    out = out + b2 + x_nhwc
    return jnp.maximum(out, 0.0)


def fold_bn(gamma, beta, mean, var, eps=1e-5):
    scale = gamma / jnp.sqrt(var + eps)
    bias = beta - mean * scale
    return scale, bias


if __name__ == "__main__":
    # Module config: BasicBlock(in_channels=8, channels=8, kernel_size=3, stride=1)
    N, Cin, H, W = 2, 8, 16, 16
    C = 8

    key = jax.random.PRNGKey(0)
    ks = jax.random.split(key, 11)

    # PyTorch input is NCHW; build it that way, transpose to NHWC for the kernel.
    x_nchw = jax.random.normal(ks[0], (N, Cin, H, W), jnp.float32)
    x_nhwc = jnp.transpose(x_nchw, (0, 2, 3, 1))

    # Conv weights (HWIO), no bias (matches nn.Conv2d(bias=False)).
    w1 = 0.1 * jax.random.normal(ks[1], (3, 3, Cin, C), jnp.float32)
    w2 = 0.1 * jax.random.normal(ks[2], (3, 3, C, C), jnp.float32)

    # BatchNorm2d params (eval-mode semantics with synthetic running stats).
    g1 = 1.0 + 0.1 * jax.random.normal(ks[3], (C,), jnp.float32)
    be1 = 0.1 * jax.random.normal(ks[4], (C,), jnp.float32)
    m1 = 0.05 * jax.random.normal(ks[5], (C,), jnp.float32)
    v1 = 0.5 + jnp.abs(jax.random.normal(ks[6], (C,), jnp.float32))
    g2 = 1.0 + 0.1 * jax.random.normal(ks[7], (C,), jnp.float32)
    be2 = 0.1 * jax.random.normal(ks[8], (C,), jnp.float32)
    m2 = 0.05 * jax.random.normal(ks[9], (C,), jnp.float32)
    v2 = 0.5 + jnp.abs(jax.random.normal(ks[10], (C,), jnp.float32))

    s1, b1 = fold_bn(g1, be1, m1, v1)
    s2, b2 = fold_bn(g2, be2, m2, v2)

    out = basic_block_forward(x_nhwc, w1, w2, s1, b1, s2, b2)
    out = jax.block_until_ready(out)

    ref = reference_forward(x_nhwc, w1, w2, s1, b1, s2, b2)
    assert out.shape == (N, H, W, C)
    max_err = jnp.max(jnp.abs(out - ref))
    assert jnp.allclose(out, ref, atol=1e-2, rtol=1e-2), \
        f"max abs err = {max_err}"

    print("KERNEL_OK")
</pallas_src>

<mosaic_0001>
module attributes {stable_mosaic.version = 11 : i64} {
  func.func @basic_block_kernel(%arg0: i32, %arg1: memref<1x24x128xf32, #tpu.memory_space<vmem>>, %arg2: memref<3x128x128xbf16, #tpu.memory_space<vmem>>, %arg3: memref<3x128x128xbf16, #tpu.memory_space<vmem>>, %arg4: memref<1x128xf32, #tpu.memory_space<vmem>>, %arg5: memref<1x128xf32, #tpu.memory_space<vmem>>, %arg6: memref<1x16x128xf32, #tpu.memory_space<vmem>>) attributes {dimension_semantics = [#tpu.dimension_semantics<parallel>], iteration_bounds = array<i64: 2>, scalar_prefetch = 0 : i64, scratch_operands = 0 : i64, tpu.core_type = #tpu.core_type<tc>, window_params = [{transform_indices = @transform_0, window_bounds = array<i64: 1, 24, 128>}, {pipeline_mode = #tpu.pipeline_mode<synchronous>, transform_indices = @transform_1, window_bounds = array<i64: 3, 128, 128>}, {pipeline_mode = #tpu.pipeline_mode<synchronous>, transform_indices = @transform_2, window_bounds = array<i64: 3, 128, 128>}, {pipeline_mode = #tpu.pipeline_mode<synchronous>, transform_indices = @transform_3, window_bounds = array<i64: 1, 128>}, {pipeline_mode = #tpu.pipeline_mode<synchronous>, transform_indices = @transform_4, window_bounds = array<i64: 1, 128>}, {transform_indices = @transform_5, window_bounds = array<i64: 1, 16, 128>}]} {
    %c0 = arith.constant 0 : index
    %c0_0 = arith.constant 0 : index
    %c0_1 = arith.constant 0 : index
    %0 = vector.load %arg1[%c0, %c0_0, %c0_1] : memref<1x24x128xf32, #tpu.memory_space<vmem>>, vector<1x24x128xf32>
    %1 = vector.shape_cast %0 : vector<1x24x128xf32> to vector<24x128xf32>
    %2 = arith.truncf %1 : vector<24x128xf32> to vector<24x128xbf16>
    %c0_2 = arith.constant 0 : index
    %c0_3 = arith.constant 0 : index
    %c0_4 = arith.constant 0 : index
    %3 = vector.load %arg2[%c0_2, %c0_3, %c0_4] : memref<3x128x128xbf16, #tpu.memory_space<vmem>>, vector<1x128x128xbf16>
    %4 = vector.shape_cast %3 : vector<1x128x128xbf16> to vector<128x128xbf16>
    %cst = arith.constant dense<0.000000e+00> : vector<24x128xf32>
    %5 = tpu.matmul %2, %4, %cst {dimension_numbers = #tpu.dot_dimension_numbers<[1], [0], [0], [1], [0, 0, 1, 1], [], []>} : vector<24x128xbf16>, vector<128x128xbf16>, vector<24x128xf32> -> vector<24x128xf32>
    %c1 = arith.constant 1 : index
    %c0_5 = arith.constant 0 : index
    %c0_6 = arith.constant 0 : index
    %6 = vector.load %arg2[%c1, %c0_5, %c0_6] : memref<3x128x128xbf16, #tpu.memory_space<vmem>>, vector<1x128x128xbf16>
    %7 = vector.shape_cast %6 : vector<1x128x128xbf16> to vector<128x128xbf16>
    %cst_7 = arith.constant dense<0.000000e+00> : vector<24x128xf32>
    %8 = tpu.matmul %2, %7, %cst_7 {dimension_numbers = #tpu.dot_dimension_numbers<[1], [0], [0], [1], [0, 0, 1, 1], [], []>} : vector<24x128xbf16>, vector<128x128xbf16>, vector<24x128xf32> -> vector<24x128xf32>
    %c2 = arith.constant 2 : index
    %c0_8 = arith.constant 0 : index
    %c0_9 = arith.constant 0 : index
    %9 = vector.load %arg2[%c2, %c0_8, %c0_9] : memref<3x128x128xbf16, #tpu.memory_space<vmem>>, vector<1x128x128xbf16>
    %10 = vector.shape_cast %9 : vector<1x128x128xbf16> to vector<128x128xbf16>
    %cst_10 = arith.constant dense<0.000000e+00> : vector<24x128xf32>
    %11 = tpu.matmul %2, %10, %cst_10 {dimension_numbers = #tpu.dot_dimension_numbers<[1], [0], [0], [1], [0, 0, 1, 1], [], []>} : vector<24x128xbf16>, vector<128x128xbf16>, vector<24x128xf32> -> vector<24x128xf32>
    %c1_i32 = arith.constant 1 : i32
    %12 = tpu.dynamic_rotate %5 by %c1_i32 dim 0 : vector<24x128xf32>, i32 -> vector<24x128xf32>
    %13 = arith.addf %8, %12 : vector<24x128xf32>
    %c23_i32 = arith.constant 23 : i32
    %14 = tpu.dynamic_rotate %11 by %c23_i32 dim 0 : vector<24x128xf32>, i32 -> vector<24x128xf32>
    %15 = arith.addf %13, %14 : vector<24x128xf32>
    %c0_11 = arith.constant 0 : index
    %c0_12 = arith.constant 0 : index
    %16 = vector.load %arg4[%c0_11, %c0_12] : memref<1x128xf32, #tpu.memory_space<vmem>>, vector<1x128xf32>
    %17 = vector.broadcast %16 : vector<1x128xf32> to vector<24x128xf32>
    %18 = arith.addf %15, %17 : vector<24x128xf32>
    %cst_13 = arith.constant 0.000000e+00 : f32
    %19 = vector.broadcast %cst_13 : f32 to vector<24x128xf32>
    %20 = arith.maximumf %18, %19 : vector<24x128xf32>
    %21 = tpu.iota {dimensions = array<i32: 1>} : vector<1x24x1xi32>
    %c16_i32 = arith.constant 16 : i32
    %22 = vector.broadcast %c16_i32 : i32 to vector<1x24x1xi32>
    %23 = arith.cmpi slt, %21, %22 : vector<1x24x1xi32>
    %24 = arith.extui %23 : vector<1x24x1xi1> to vector<1x24x1xi32>
    %25 = arith.sitofp %24 : vector<1x24x1xi32> to vector<1x24x1xf32>
    %26 = vector.shape_cast %20 : vector<24x128xf32> to vector<1x24x128xf32>
    %27 = vector.broadcast %25 : vector<1x24x1xf32> to vector<1x24x128xf32>
    %28 = arith.mulf %26, %27 : vector<1x24x128xf32>
    %29 = vector.shape_cast %28 : vector<1x24x128xf32> to vector<24x128xf32>
    %30 = arith.truncf %29 : vector<24x128xf32> to vector<24x128xbf16>
    %c0_14 = arith.constant 0 : index
    %c0_15 = arith.constant 0 : index
    %c0_16 = arith.constant 0 : index
    %31 = vector.load %arg3[%c0_14, %c0_15, %c0_16] : memref<3x128x128xbf16, #tpu.memory_space<vmem>>, vector<1x128x128xbf16>
    %32 = vector.shape_cast %31 : vector<1x128x128xbf16> to vector<128x128xbf16>
    %cst_17 = arith.constant dense<0.000000e+00> : vector<24x128xf32>
    %33 = tpu.matmul %30, %32, %cst_17 {dimension_numbers = #tpu.dot_dimension_numbers<[1], [0], [0], [1], [0, 0, 1, 1], [], []>} : vector<24x128xbf16>, vector<128x128xbf16>, vector<24x128xf32> -> vector<24x128xf32>
    %c1_18 = arith.constant 1 : index
    %c0_19 = arith.constant 0 : index
    %c0_20 = arith.constant 0 : index
    %34 = vector.load %arg3[%c1_18, %c0_19, %c0_20] : memref<3x128x128xbf16, #tpu.memory_space<vmem>>, vector<1x128x128xbf16>
    %35 = vector.shape_cast %34 : vector<1x128x128xbf16> to vector<128x128xbf16>
    %cst_21 = arith.constant dense<0.000000e+00> : vector<24x128xf32>
    %36 = tpu.matmul %30, %35, %cst_21 {dimension_numbers = #tpu.dot_dimension_numbers<[1], [0], [0], [1], [0, 0, 1, 1], [], []>} : vector<24x128xbf16>, vector<128x128xbf16>, vector<24x128xf32> -> vector<24x128xf32>
    %c2_22 = arith.constant 2 : index
    %c0_23 = arith.constant 0 : index
    %c0_24 = arith.constant 0 : index
    %37 = vector.load %arg3[%c2_22, %c0_23, %c0_24] : memref<3x128x128xbf16, #tpu.memory_space<vmem>>, vector<1x128x128xbf16>
    %38 = vector.shape_cast %37 : vector<1x128x128xbf16> to vector<128x128xbf16>
    %cst_25 = arith.constant dense<0.000000e+00> : vector<24x128xf32>
    %39 = tpu.matmul %30, %38, %cst_25 {dimension_numbers = #tpu.dot_dimension_numbers<[1], [0], [0], [1], [0, 0, 1, 1], [], []>} : vector<24x128xbf16>, vector<128x128xbf16>, vector<24x128xf32> -> vector<24x128xf32>
    %c1_i32_26 = arith.constant 1 : i32
    %40 = tpu.dynamic_rotate %33 by %c1_i32_26 dim 0 : vector<24x128xf32>, i32 -> vector<24x128xf32>
    %41 = arith.addf %36, %40 : vector<24x128xf32>
    %c23_i32_27 = arith.constant 23 : i32
    %42 = tpu.dynamic_rotate %39 by %c23_i32_27 dim 0 : vector<24x128xf32>, i32 -> vector<24x128xf32>
    %43 = arith.addf %41, %42 : vector<24x128xf32>
    %c0_28 = arith.constant 0 : index
    %c0_29 = arith.constant 0 : index
    %44 = vector.load %arg5[%c0_28, %c0_29] : memref<1x128xf32, #tpu.memory_space<vmem>>, vector<1x128xf32>
    %45 = vector.broadcast %44 : vector<1x128xf32> to vector<24x128xf32>
    %46 = arith.addf %43, %45 : vector<24x128xf32>
    %47 = arith.addf %46, %1 : vector<24x128xf32>
    %cst_30 = arith.constant 0.000000e+00 : f32
    %48 = vector.broadcast %cst_30 : f32 to vector<24x128xf32>
    %49 = arith.maximumf %47, %48 : vector<24x128xf32>
    %50 = vector.shape_cast %49 : vector<24x128xf32> to vector<1x24x128xf32>
    %51 = vector.extract_strided_slice %50 {offsets = [0, 0, 0], sizes = [1, 16, 128], strides = [1, 1, 1]} : vector<1x24x128xf32> to vector<1x16x128xf32>
    %c0_31 = arith.constant 0 : index
    %c0_32 = arith.constant 0 : index
    %c0_33 = arith.constant 0 : index
    %52 = vector.load %arg6[%c0_31, %c0_32, %c0_33] : memref<1x16x128xf32, #tpu.memory_space<vmem>>, vector<1x16x128xf32>
    tpu.vector_store %arg6[%c0_31, %c0_32, %c0_33], %51 {strides = array<i32>} : memref<1x16x128xf32, #tpu.memory_space<vmem>>, vector<1x16x128xf32>,
    return
  }
  func.func @transform_0(%arg0: i32) -> (i32, i32, i32) {
    %c0_i32 = arith.constant 0 : i32
    %c0_i32_0 = arith.constant 0 : i32
    %c0_i32_1 = arith.constant 0 : i32
    return %arg0, %c0_i32, %c0_i32_0 : i32, i32, i32
  }
  func.func @transform_1(%arg0: i32) -> (i32, i32, i32) {
    %c0_i32 = arith.constant 0 : i32
    %c0_i32_0 = arith.constant 0 : i32
    %c0_i32_1 = arith.constant 0 : i32
    %c0_i32_2 = arith.constant 0 : i32
    return %c0_i32, %c0_i32_0, %c0_i32_1 : i32, i32, i32
  }
  func.func @transform_2(%arg0: i32) -> (i32, i32, i32) {
    %c0_i32 = arith.constant 0 : i32
    %c0_i32_0 = arith.constant 0 : i32
    %c0_i32_1 = arith.constant 0 : i32
    %c0_i32_2 = arith.constant 0 : i32
    return %c0_i32, %c0_i32_0, %c0_i32_1 : i32, i32, i32
  }
  func.func @transform_3(%arg0: i32) -> (i32, i32) {
    %c0_i32 = arith.constant 0 : i32
    %c0_i32_0 = arith.constant 0 : i32
    %c0_i32_1 = arith.constant 0 : i32
    return %c0_i32, %c0_i32_0 : i32, i32
  }
  func.func @transform_4(%arg0: i32) -> (i32, i32) {
    %c0_i32 = arith.constant 0 : i32
    %c0_i32_0 = arith.constant 0 : i32
    %c0_i32_1 = arith.constant 0 : i32
    return %c0_i32, %c0_i32_0 : i32, i32
  }
  func.func @transform_5(%arg0: i32) -> (i32, i32, i32) {
    %c0_i32 = arith.constant 0 : i32
    %c0_i32_0 = arith.constant 0 : i32
    %c0_i32_1 = arith.constant 0 : i32
    return %arg0, %c0_i32, %c0_i32_0 : i32, i32, i32
  }
}

</mosaic_0001>

<llo_original>
// kernel: basic_block_forward.1
$region0: #{basic_block_forward.1}
  #allocation0 [shape = 'u32[]', space=smem, size = 0x4, offset = 0x4, fixed_abs, tag = 'smem constant byte address 0x4 - core index']
  #allocation1 [shape = 'u32[144,128]{1,0:T(1,128)}', space=vmem, size = 0x12000, scoped, tag = 'internal scratch']
  %s0 = inlined_call_operand.vmem [shape: f32[2,24,128], index: 0, kind: input, shape index: {}]
  %s1 = inlined_call_operand.vmem [shape: bf16[3,128,128], index: 1, kind: input, shape index: {}]
  %s2 = inlined_call_operand.vmem [shape: bf16[3,128,128], index: 2, kind: input, shape index: {}]
  %s3 = inlined_call_operand.vmem [shape: f32[1,128], index: 3, kind: input, shape index: {}]
  %s4 = inlined_call_operand.vmem [shape: f32[1,128], index: 4, kind: input, shape index: {}]
  %s5 = inlined_call_operand.vmem [shape: f32[2,16,128], index: 5, kind: output, shape index: {}]
  %s6 = sld [smem:[#allocation0]]
  $region53: #{basic_block_forward.1} parent=0
    _
  %s8 = ssub.s32 1, %s6
  %s9 = scalar_select 0, %s8, %s6
  loop: start=0, step=1, limit=4
  $region2: #{basic_block_forward.1} parent=0 // loop_pre_header
    _
  $region3: #{basic_block_forward.1} parent=0 // loop_header
    %s11 = sphi 0, %s15
    %p12 = scmp.ge.s32.totalorder %s11, 4
    %s21 = sphi 0, %s23
    %s24 = sphi 0, %s21
    %s25 = sphi 0, %s24
    %s41 = sphi 0, %s25
    %s45 = sphi 0, %s45
    %s47 = sphi 0, %s45
    %s48 = sphi 0, %s47
    %s62 = sphi 0, %s48
    %s66 = sphi 0, %s66
    %s68 = sphi 0, %s66
    %s69 = sphi 0, %s68
    %s83 = sphi 0, %s69
    %s87 = sphi 0, %s87
    %s89 = sphi 0, %s87
    %s90 = sphi 0, %s89
    %s104 = sphi 0, %s90
    %s108 = sphi 0, %s108
    %s110 = sphi 0, %s108
    %s111 = sphi 0, %s110
    %s125 = sphi 0, %s111
    %s131 = sphi 0, %s133
    %s134 = sphi 0, %s131
    %s135 = sphi 0, %s134
    %s151 = sphi 0, %s135
  $region4: #{basic_block_forward.1} parent=0 // loop_header_branch
    %14 = sbr.rel (%p12) target = $region8
  $region5: #{basic_block_forward.1} parent=0 // loop_body
    %s16 = ssub.s32 %s11, 1
    %s17 = ssub.s32 %s11, 2
    %s18 = sadd.s32 %s11, 1
    %s19 = ssub.s32 %s11, %s18
    %p20 = scmp.eq.s32.totalorder %s19, 0
    %s22 = sadd.s32 %s21, 1
    %s23 = scalar_select %p20, %s21, %s22
    %p26 = pneg %p20
    %p27 = scmp.eq.s32.totalorder %s11, 1
    %p28 = por %p26, %p27
    %p29 = scmp.ne.s32.totalorder %s21, %s24
    %p30 = scmp.eq.s32.totalorder %s11, 0
    %p31 = por %p29, %p30
    %p32 = scmp.ne.s32.totalorder %s21, %s24
    %p33 = scmp.eq.s32.totalorder %s16, 1
    %p34 = por %p32, %p33
    %p35 = scmp.ne.s32.totalorder %s24, %s25
    %p36 = scmp.eq.s32.totalorder %s16, 0
    %p37 = por %p35, %p36
    %p38 = scmp.ne.s32.totalorder %s24, %s25
    %p39 = scmp.eq.s32.totalorder %s17, 1
    %p40 = por %p38, %p39
    %p42 = scmp.ne.s32.totalorder %s25, %s41
    %p43 = scmp.eq.s32.totalorder %s17, 0
    %p44 = por %p42, %p43
    %s46 = sadd.s32 %s45, 1
    %p49 = scmp.eq.s32.totalorder %s11, 1
    %p50 = scmp.ne.s32.totalorder %s45, %s47
    %p51 = scmp.eq.s32.totalorder %s11, 0
    %p52 = por %p50, %p51
    %p53 = scmp.ne.s32.totalorder %s45, %s47
    %p54 = scmp.eq.s32.totalorder %s16, 1
    %p55 = por %p53, %p54
    %p56 = scmp.ne.s32.totalorder %s47, %s48
    %p57 = scmp.eq.s32.totalorder %s16, 0
    %p58 = por %p56, %p57
    %p59 = scmp.ne.s32.totalorder %s47, %s48
    %p60 = scmp.eq.s32.totalorder %s17, 1
    %p61 = por %p59, %p60
    %p63 = scmp.ne.s32.totalorder %s48, %s62
    %p64 = scmp.eq.s32.totalorder %s17, 0
    %p65 = por %p63, %p64
    %s67 = sadd.s32 %s66, 1
    %p70 = scmp.eq.s32.totalorder %s11, 1
    %p71 = scmp.ne.s32.totalorder %s66, %s68
    %p72 = scmp.eq.s32.totalorder %s11, 0
    %p73 = por %p71, %p72
    %p74 = scmp.ne.s32.totalorder %s66, %s68
    %p75 = scmp.eq.s32.totalorder %s16, 1
    %p76 = por %p74, %p75
    %p77 = scmp.ne.s32.totalorder %s68, %s69
    %p78 = scmp.eq.s32.totalorder %s16, 0
    %p79 = por %p77, %p78
    %p80 = scmp.ne.s32.totalorder %s68, %s69
    %p81 = scmp.eq.s32.totalorder %s17, 1
    %p82 = por %p80, %p81
    %p84 = scmp.ne.s32.totalorder %s69, %s83
    %p85 = scmp.eq.s32.totalorder %s17, 0
    %p86 = por %p84, %p85
    %s88 = sadd.s32 %s87, 1
    %p91 = scmp.eq.s32.totalorder %s11, 1
    %p92 = scmp.ne.s32.totalorder %s87, %s89
    %p93 = scmp.eq.s32.totalorder %s11, 0
    %p94 = por %p92, %p93
    %p95 = scmp.ne.s32.totalorder %s87, %s89
    %p96 = scmp.eq.s32.totalorder %s16, 1
    %p97 = por %p95, %p96
    %p98 = scmp.ne.s32.totalorder %s89, %s90
    %p99 = scmp.eq.s32.totalorder %s16, 0
    %p100 = por %p98, %p99
    %p101 = scmp.ne.s32.totalorder %s89, %s90
    %p102 = scmp.eq.s32.totalorder %s17, 1
    %p103 = por %p101, %p102
    %p105 = scmp.ne.s32.totalorder %s90, %s104
    %p106 = scmp.eq.s32.totalorder %s17, 0
    %p107 = por %p105, %p106
    %s109 = sadd.s32 %s108, 1
    %p112 = scmp.eq.s32.totalorder %s11, 1
    %p113 = scmp.ne.s32.totalorder %s108, %s110
    %p114 = scmp.eq.s32.totalorder %s11, 0
    %p115 = por %p113, %p114
    %p116 = scmp.ne.s32.totalorder %s108, %s110
    %p117 = scmp.eq.s32.totalorder %s16, 1
    %p118 = por %p116, %p117
    %p119 = scmp.ne.s32.totalorder %s110, %s111
    %p120 = scmp.eq.s32.totalorder %s16, 0
    %p121 = por %p119, %p120
    %p122 = scmp.ne.s32.totalorder %s110, %s111
    %p123 = scmp.eq.s32.totalorder %s17, 1
    %p124 = por %p122, %p123
    %p126 = scmp.ne.s32.totalorder %s111, %s125
    %p127 = scmp.eq.s32.totalorder %s17, 0
    %p128 = por %p126, %p127
    %s129 = ssub.s32 %s11, %s18
    %p130 = scmp.eq.s32.totalorder %s129, 0
    %s132 = sadd.s32 %s131, 1
    %s133 = scalar_select %p130, %s131, %s132
    %p136 = pneg %p130
    %p137 = scmp.eq.s32.totalorder %s11, 1
    %p138 = por %p136, %p137
    %p139 = scmp.ne.s32.totalorder %s131, %s134
    %p140 = scmp.eq.s32.totalorder %s11, 0
    %p141 = por %p139, %p140
    %p142 = scmp.ne.s32.totalorder %s131, %s134
    %p143 = scmp.eq.s32.totalorder %s16, 1
    %p144 = por %p142, %p143
    %p145 = scmp.ne.s32.totalorder %s134, %s135
    %p146 = scmp.eq.s32.totalorder %s16, 0
    %p147 = por %p145, %p146
    %p148 = scmp.ne.s32.totalorder %s134, %s135
    %p149 = scmp.eq.s32.totalorder %s17, 1
    %p150 = por %p148, %p149
    %p152 = scmp.ne.s32.totalorder %s135, %s151
    %p153 = scmp.eq.s32.totalorder %s17, 0
    %p154 = por %p152, %p153
    %p155 = scmp.le.s32.totalorder 1, %s11
    %p156 = scmp.lt.s32.totalorder %s11, 3
    %p157 = pnand %p155, %p156
    %p158 = pneg %p157
    // Predicated region
    $region9: #{basic_block_forward.1} parent=5 // pred_check
      _
    $region10: #{basic_block_forward.1} parent=5 // pred_check_branch
      %160 = sbr.rel (%p157) target = $region12
    $region11: #{basic_block_forward.1} parent=5 // pred_region
      %s161 = ssub.s32 %s11, 1
      // Predicated region
      $region13: #{basic_block_forward.1} parent=11 // pred_check
        %p162 = pneg %p58
      $region14: #{basic_block_forward.1} parent=11 // pred_check_branch
        %164 = sbr.rel (%p162) target = $region16
      $region15: #{basic_block_forward.1} parent=11 // pred_region
        _
      $region16: #{basic_block_forward.1} parent=11 // pred_fallthru
        _
      // Predicated region
      $region17: #{basic_block_forward.1} parent=11 // pred_check
        %p165 = pneg %p79
      $region18: #{basic_block_forward.1} parent=11 // pred_check_branch
        %167 = sbr.rel (%p165) target = $region20
      $region19: #{basic_block_forward.1} parent=11 // pred_region
        _
      $region20: #{basic_block_forward.1} parent=11 // pred_fallthru
        _
      // Predicated region
      $region21: #{basic_block_forward.1} parent=11 // pred_check
        %p168 = pneg %p100
      $region22: #{basic_block_forward.1} parent=11 // pred_check_branch
        %170 = sbr.rel (%p168) target = $region24
      $region23: #{basic_block_forward.1} parent=11 // pred_region
        _
      $region24: #{basic_block_forward.1} parent=11 // pred_fallthru
        _
      // Predicated region
      $region25: #{basic_block_forward.1} parent=11 // pred_check
        %p171 = pneg %p121
      $region26: #{basic_block_forward.1} parent=11 // pred_check_branch
        %173 = sbr.rel (%p171) target = $region28
      $region27: #{basic_block_forward.1} parent=11 // pred_region
        _
      $region28: #{basic_block_forward.1} parent=11 // pred_fallthru
        _
    $region12: #{basic_block_forward.1} parent=5 // pred_fallthru
      _
    %p174 = scmp.lt.s32.totalorder %s11, 2
    // Predicated region
    $region29: #{basic_block_forward.1} parent=5 // pred_check
      %p175 = pneg %p174
    $region30: #{basic_block_forward.1} parent=5 // pred_check_branch
      %177 = sbr.rel (%p175) target = $region32
    $region31: #{basic_block_forward.1} parent=5 // pred_region
      // Predicated region
      $region33: #{basic_block_forward.1} parent=31 // pred_check
        %p178 = pneg %p31
      $region34: #{basic_block_forward.1} parent=31 // pred_check_branch
        %180 = sbr.rel (%p178) target = $region36
      $region35: #{basic_block_forward.1} parent=31 // pred_region
        %p181 = scmp.lt.s32.totalorder %s11, 1
        %s182 = scalar_select %p181, %s11, 1
        %s183 = smul.addr %s182, 3
        %s184 = smul.addr %s183, 8
        %s185 = scalar_lea.vmem %s0, %s184
      $region36: #{basic_block_forward.1} parent=31 // pred_fallthru
        _
    $region32: #{basic_block_forward.1} parent=5 // pred_fallthru
      _
    %p186 = scmp.le.s32.totalorder 1, %s11
    %p187 = scmp.lt.s32.totalorder %s11, 3
    %p188 = pnand %p186, %p187
    %p189 = pneg %p188
    // Predicated region
    $region37: #{basic_block_forward.1} parent=5 // pred_check
      _
    $region38: #{basic_block_forward.1} parent=5 // pred_check_branch
      %191 = sbr.rel (%p188) target = $region40
    $region39: #{basic_block_forward.1} parent=5 // pred_region
      %s192 = ssub.s32 %s11, 1
      %p193 = scmp.lt.s32.totalorder %s16, 1
      %s194 = scalar_select %p193, %s16, 1
      %s195 = smul.addr %s194, 3
      %s196 = smul.addr %s195, 8
      %s197 = scalar_lea.vmem %s0, %s196
      %p198 = pneg %p37
      %p199 = pneg %p34
      %p200 = pneg %p58
      %p201 = pneg %p55
      %p202 = pneg %p79
      %p203 = pneg %p76
      %p204 = pneg %p100
      %p205 = pneg %p97
      %p206 = pneg %p121
      %p207 = pneg %p118
      %p208 = pneg %p147
      %p209 = pneg %p144
      %p210 = scmp.lt.s32.totalorder %s16, 1
      %s211 = scalar_select %p210, %s16, 1
      %s212 = smul.addr %s211, 2
      %s213 = smul.addr %s212, 8
      %s214 = scalar_lea.vmem %s5, %s213
      %p215 = scmp.lt.s32.totalorder %s16, 1
      %s216 = scalar_select %p215, %s16, 1
      %s217 = smul.addr %s216, 3
      %s218 = smul.addr %s217, 8
      %s219 = scalar_lea.vmem %s0, %s218
      %p220 = scmp.lt.s32.totalorder %s16, 1
      %s221 = scalar_select %p220, %s16, 1
      %s222 = smul.addr %s221, 2
      %s223 = smul.addr %s222, 8
      %s224 = scalar_lea.vmem %s5, %s223
      %v226 = vld [vmem:[%s219] sm:$0xff]
      %v227 = vld [vmem:[%s219 + $0x8] sm:$0xff]
      %v228 = vld [vmem:[%s219 + $0x10] sm:$0xff]
      %v229 = vpack.c.bf16 %v227, %v226
      %v230 = vpack.c.bf16 %v228, %v228
      %v231 = vld [vmem:[%s1] sm:$0xf]
      %v232 = vld [vmem:[%s1 + $0x4] sm:$0xf]
      %v233 = vld [vmem:[%s1 + $0x8] sm:$0xf]
      %v234 = vld [vmem:[%s1 + $0xc] sm:$0xf]
      %v235 = vld [vmem:[%s1 + $0x10] sm:$0xf]
      %v236 = vld [vmem:[%s1 + $0x14] sm:$0xf]
      %v237 = vld [vmem:[%s1 + $0x18] sm:$0xf]
      %v238 = vld [vmem:[%s1 + $0x1c] sm:$0xf]
      %v239 = vld [vmem:[%s1 + $0x20] sm:$0xf]
      %v240 = vld [vmem:[%s1 + $0x24] sm:$0xf]
      %v241 = vld [vmem:[%s1 + $0x28] sm:$0xf]
      %v242 = vld [vmem:[%s1 + $0x2c] sm:$0xf]
      %v243 = vld [vmem:[%s1 + $0x30] sm:$0xf]
      %v244 = vld [vmem:[%s1 + $0x34] sm:$0xf]
      %v245 = vld [vmem:[%s1 + $0x38] sm:$0xf]
      %v246 = vld [vmem:[%s1 + $0x3c] sm:$0xf]
      %v263 = vunpack.c.l.b16 %v231
      %v264 = vunpack.c.l.b16 %v232
      %v265 = vunpack.c.l.b16 %v233
      %v266 = vunpack.c.l.b16 %v234
      %v267 = vunpack.c.l.b16 %v235
      %v268 = vunpack.c.l.b16 %v236
      %v269 = vunpack.c.l.b16 %v237
      %v270 = vunpack.c.l.b16 %v238
      %v271 = vunpack.c.l.b16 %v239
      %v272 = vunpack.c.l.b16 %v240
      %v273 = vunpack.c.l.b16 %v241
      %v274 = vunpack.c.l.b16 %v242
      %v275 = vunpack.c.l.b16 %v243
      %v276 = vunpack.c.l.b16 %v244
      %v277 = vunpack.c.l.b16 %v245
      %v278 = vunpack.c.l.b16 %v246
      %v279 = vpack.c.b16 %v264, %v263
      %v280 = vpack.c.b16 %v266, %v265
      %v281 = vpack.c.b16 %v268, %v267
      %v282 = vpack.c.b16 %v270, %v269
      %v283 = vpack.c.b16 %v272, %v271
      %v284 = vpack.c.b16 %v274, %v273
      %v285 = vpack.c.b16 %v276, %v275
      %v286 = vpack.c.b16 %v278, %v277
      %295 = vmatprep.subr.bf16.mxu0 0
      %296 = vmatpush1.bf16.msra.mxu0 %v279
      %297 = vmatprep.subr.bf16.mxu0 0
      %298 = vmatpush1.bf16.msra.mxu0 %v280
      %299 = vmatprep.subr.bf16.mxu0 0
      %300 = vmatpush1.bf16.msra.mxu0 %v281
      %301 = vmatprep.subr.bf16.mxu0 0
      %302 = vmatpush1.bf16.msra.mxu0 %v282
      %303 = vmatprep.subr.bf16.mxu0 0
      %304 = vmatpush1.bf16.msra.mxu0 %v283
      %305 = vmatprep.subr.bf16.mxu0 0
      %306 = vmatpush1.bf16.msra.mxu0 %v284
      %307 = vmatprep.subr.bf16.mxu0 0
      %308 = vmatpush1.bf16.msra.mxu0 %v285
      %309 = vmatprep.subr.bf16.mxu0 0
      %310 = vmatpush1.bf16.msra.mxu0 %v286
      %311 = vmatprep.subr.bf16.mxu0 0
      %312 = vmatpush1.bf16.msra.mxu0 0
      %313 = vmatprep.subr.bf16.mxu0 0
      %314 = vmatpush1.bf16.msra.mxu0 0
      %315 = vmatprep.subr.bf16.mxu0 0
      %316 = vmatpush1.bf16.msra.mxu0 0
      %317 = vmatprep.subr.bf16.mxu0 0
      %318 = vmatpush1.bf16.msra.mxu0 0
      %319 = vmatprep.subr.bf16.mxu0 0
      %320 = vmatpush1.bf16.msra.mxu0 0
      %321 = vmatprep.subr.bf16.mxu0 0
      %322 = vmatpush1.bf16.msra.mxu0 0
      %323 = vmatprep.subr.bf16.mxu0 0
      %324 = vmatpush1.bf16.msra.mxu0 0
      %325 = vmatprep.subr.bf16.mxu0 0
      %326 = vmatpush1.bf16.msra.mxu0 0
      %327 = vmatprep.mubr.bf16.mxu0 0
      %328 = vmatmul.mubr.bf16.gmra.mrb[0].mxu0 %v229
      %v329 = vpop.f32.mrb[0].mxu0
      %v330 = vadd.f32 0.0, %v329
      %v331 = vpop.f32.mrb[0].mxu0
      %v332 = vpop.f32.mrb[0].mxu0
      %v333 = vadd.f32 0.0, %v332
      %v334 = vpop.f32.mrb[0].mxu0
      %335 = vmatprep.mubr.bf16.mxu0 0
      %336 = vmatmul.mubr.bf16.gmra.mrb[0].mxu0 %v230
      %v337 = vpop.f32.mrb[0].mxu0
      %v338 = vadd.f32 0.0, %v337
      %v339 = vpop.f32.mrb[0].mxu0
      %v340 = vpop.f32.mrb[0].mxu0
      %v341 = vpop.f32.mrb[0].mxu0
      %342 = vdwg.mxu0
      %s343 = scalar_lea.vmem %s1, 64
      %v344 = vld [vmem:[%s343] sm:$0xf]
      %v345 = vld [vmem:[%s343 + $0x4] sm:$0xf]
      %v346 = vld [vmem:[%s343 + $0x8] sm:$0xf]
      %v347 = vld [vmem:[%s343 + $0xc] sm:$0xf]
      %v348 = vld [vmem:[%s343 + $0x10] sm:$0xf]
      %v349 = vld [vmem:[%s343 + $0x14] sm:$0xf]
      %v350 = vld [vmem:[%s343 + $0x18] sm:$0xf]
      %v351 = vld [vmem:[%s343 + $0x1c] sm:$0xf]
      %v352 = vld [vmem:[%s343 + $0x20] sm:$0xf]
      %v353 = vld [vmem:[%s343 + $0x24] sm:$0xf]
      %v354 = vld [vmem:[%s343 + $0x28] sm:$0xf]
      %v355 = vld [vmem:[%s343 + $0x2c] sm:$0xf]
      %v356 = vld [vmem:[%s343 + $0x30] sm:$0xf]
      %v357 = vld [vmem:[%s343 + $0x34] sm:$0xf]
      %v358 = vld [vmem:[%s343 + $0x38] sm:$0xf]
      %v359 = vld [vmem:[%s343 + $0x3c] sm:$0xf]
      %s360 = scalar_lea.vmem %s1, 128
      %v361 = vld [vmem:[%s360] sm:$0xf]
      %v362 = vld [vmem:[%s360 + $0x4] sm:$0xf]
      %v363 = vld [vmem:[%s360 + $0x8] sm:$0xf]
      %v364 = vld [vmem:[%s360 + $0xc] sm:$0xf]
      %v365 = vld [vmem:[%s360 + $0x10] sm:$0xf]
      %v366 = vld [vmem:[%s360 + $0x14] sm:$0xf]
      %v367 = vld [vmem:[%s360 + $0x18] sm:$0xf]
      %v368 = vld [vmem:[%s360 + $0x1c] sm:$0xf]
      %v369 = vld [vmem:[%s360 + $0x20] sm:$0xf]
      %v370 = vld [vmem:[%s360 + $0x24] sm:$0xf]
      %v371 = vld [vmem:[%s360 + $0x28] sm:$0xf]
      %v372 = vld [vmem:[%s360 + $0x2c] sm:$0xf]
      %v373 = vld [vmem:[%s360 + $0x30] sm:$0xf]
      %v374 = vld [vmem:[%s360 + $0x34] sm:$0xf]
      %v375 = vld [vmem:[%s360 + $0x38] sm:$0xf]
      %v376 = vld [vmem:[%s360 + $0x3c] sm:$0xf]
      %v393 = vunpack.c.l.b16 %v361
      %v394 = vunpack.c.l.b16 %v362
      %v395 = vunpack.c.l.b16 %v363
      %v396 = vunpack.c.l.b16 %v364
      %v397 = vunpack.c.l.b16 %v365
      %v398 = vunpack.c.l.b16 %v366
      %v399 = vunpack.c.l.b16 %v367
      %v400 = vunpack.c.l.b16 %v368
      %v401 = vunpack.c.l.b16 %v369
      %v402 = vunpack.c.l.b16 %v370
      %v403 = vunpack.c.l.b16 %v371
      %v404 = vunpack.c.l.b16 %v372
      %v405 = vunpack.c.l.b16 %v373
      %v406 = vunpack.c.l.b16 %v374
      %v407 = vunpack.c.l.b16 %v375
      %v408 = vunpack.c.l.b16 %v376
      %v409 = vpack.c.b16 %v394, %v393
      %v410 = vpack.c.b16 %v396, %v395
      %v411 = vpack.c.b16 %v398, %v397
      %v412 = vpack.c.b16 %v400, %v399
      %v413 = vpack.c.b16 %v402, %v401
      %v414 = vpack.c.b16 %v404, %v403
      %v415 = vpack.c.b16 %v406, %v405
      %v416 = vpack.c.b16 %v408, %v407
      %425 = vmatprep.subr.bf16.mxu0 0
      %426 = vmatpush1.bf16.msra.mxu0 %v409
      %427 = vmatprep.subr.bf16.mxu0 0
      %428 = vmatpush1.bf16.msra.mxu0 %v410
      %429 = vmatprep.subr.bf16.mxu0 0
      %430 = vmatpush1.bf16.msra.mxu0 %v411
      %431 = vmatprep.subr.bf16.mxu0 0
      %432 = vmatpush1.bf16.msra.mxu0 %v412
      %433 = vmatprep.subr.bf16.mxu0 0
      %434 = vmatpush1.bf16.msra.mxu0 %v413
      %435 = vmatprep.subr.bf16.mxu0 0
      %436 = vmatpush1.bf16.msra.mxu0 %v414
      %437 = vmatprep.subr.bf16.mxu0 0
      %438 = vmatpush1.bf16.msra.mxu0 %v415
      %439 = vmatprep.subr.bf16.mxu0 0
      %440 = vmatpush1.bf16.msra.mxu0 %v416
      %441 = vmatprep.subr.bf16.mxu0 0
      %442 = vmatpush1.bf16.msra.mxu0 0
      %443 = vmatprep.subr.bf16.mxu0 0
      %444 = vmatpush1.bf16.msra.mxu0 0
      %445 = vmatprep.subr.bf16.mxu0 0
      %446 = vmatpush1.bf16.msra.mxu0 0
      %447 = vmatprep.subr.bf16.mxu0 0
      %448 = vmatpush1.bf16.msra.mxu0 0
      %449 = vmatprep.subr.bf16.mxu0 0
      %450 = vmatpush1.bf16.msra.mxu0 0
      %451 = vmatprep.subr.bf16.mxu0 0
      %452 = vmatpush1.bf16.msra.mxu0 0
      %453 = vmatprep.subr.bf16.mxu0 0
      %454 = vmatpush1.bf16.msra.mxu0 0
      %455 = vmatprep.subr.bf16.mxu0 0
      %456 = vmatpush1.bf16.msra.mxu0 0
      %457 = vmatprep.mubr.bf16.mxu0 0
      %458 = vmatmul.mubr.bf16.gmra.mrb[0].mxu0 %v229
      %v459 = vpop.f32.mrb[0].mxu0
      %v460 = vadd.f32 0.0, %v459
      %v461 = vpop.f32.mrb[0].mxu0
      %v462 = vpop.f32.mrb[0].mxu0
      %v463 = vadd.f32 0.0, %v462
      %v464 = vpop.f32.mrb[0].mxu0
      %465 = vmatprep.mubr.bf16.mxu0 0
      %466 = vmatmul.mubr.bf16.gmra.mrb[0].mxu0 %v230
      %v467 = vpop.f32.mrb[0].mxu0
      %v468 = vadd.f32 0.0, %v467
      %v469 = vpop.f32.mrb[0].mxu0
      %v470 = vpop.f32.mrb[0].mxu0
      %v471 = vpop.f32.mrb[0].mxu0
      %472 = vdwg.mxu0
      %v473 = vrot.slane %v330, 7
      %v474 = vrot.slane %v333, 7
      %v475 = vrot.slane %v338, 7
      %v476 = vlaneseq
      %v477 = vshrl.u32 %v476, 7
      %vm478 = vcmp.lt.s32.totalorder %v477, 1
      %v479 = vsel %vm478, %v474, %v475
      %v480 = vsel %vm478, %v473, %v474
      %v481 = vsel %vm478, %v475, %v473
      %v498 = vunpack.c.l.b16 %v344
      %v499 = vunpack.c.l.b16 %v345
      %v500 = vunpack.c.l.b16 %v346
      %v501 = vunpack.c.l.b16 %v347
      %v502 = vunpack.c.l.b16 %v348
      %v503 = vunpack.c.l.b16 %v349
      %v504 = vunpack.c.l.b16 %v350
      %v505 = vunpack.c.l.b16 %v351
      %v506 = vunpack.c.l.b16 %v352
      %v507 = vunpack.c.l.b16 %v353
      %v508 = vunpack.c.l.b16 %v354
      %v509 = vunpack.c.l.b16 %v355
      %v510 = vunpack.c.l.b16 %v356
      %v511 = vunpack.c.l.b16 %v357
      %v512 = vunpack.c.l.b16 %v358
      %v513 = vunpack.c.l.b16 %v359
      %v514 = vpack.c.b16 %v499, %v498
      %v515 = vpack.c.b16 %v501, %v500
      %v516 = vpack.c.b16 %v503, %v502
      %v517 = vpack.c.b16 %v505, %v504
      %v518 = vpack.c.b16 %v507, %v506
      %v519 = vpack.c.b16 %v509, %v508
      %v520 = vpack.c.b16 %v511, %v510
      %v521 = vpack.c.b16 %v513, %v512
      %530 = vmatprep.subr.bf16.mxu0 0
      %531 = vmatpush1.bf16.msra.mxu0 %v514
      %532 = vmatprep.subr.bf16.mxu0 0
      %533 = vmatpush1.bf16.msra.mxu0 %v515
      %534 = vmatprep.subr.bf16.mxu0 0
      %535 = vmatpush1.bf16.msra.mxu0 %v516
      %536 = vmatprep.subr.bf16.mxu0 0
      %537 = vmatpush1.bf16.msra.mxu0 %v517
      %538 = vmatprep.subr.bf16.mxu0 0
      %539 = vmatpush1.bf16.msra.mxu0 %v518
      %540 = vmatprep.subr.bf16.mxu0 0
      %541 = vmatpush1.bf16.msra.mxu0 %v519
      %542 = vmatprep.subr.bf16.mxu0 0
      %543 = vmatpush1.bf16.msra.mxu0 %v520
      %544 = vmatprep.subr.bf16.mxu0 0
      %545 = vmatpush1.bf16.msra.mxu0 %v521
      %546 = vmatprep.subr.bf16.mxu0 0
      %547 = vmatpush1.bf16.msra.mxu0 0
      %548 = vmatprep.subr.bf16.mxu0 0
      %549 = vmatpush1.bf16.msra.mxu0 0
      %550 = vmatprep.subr.bf16.mxu0 0
      %551 = vmatpush1.bf16.msra.mxu0 0
      %552 = vmatprep.subr.bf16.mxu0 0
      %553 = vmatpush1.bf16.msra.mxu0 0
      %554 = vmatprep.subr.bf16.mxu0 0
      %555 = vmatpush1.bf16.msra.mxu0 0
      %556 = vmatprep.subr.bf16.mxu0 0
      %557 = vmatpush1.bf16.msra.mxu0 0
      %558 = vmatprep.subr.bf16.mxu0 0
      %559 = vmatpush1.bf16.msra.mxu0 0
      %560 = vmatprep.subr.bf16.mxu0 0
      %561 = vmatpush1.bf16.msra.mxu0 0
      %562 = vmatprep.mubr.bf16.mxu0 0
      %563 = vmatmul.mubr.bf16.gmra.mrb[0].mxu0 %v229
      %v564 = vpop.f32.mrb[0].mxu0
      %v565 = vadd.f32 %v481, %v564
      %v566 = vpop.f32.mrb[0].mxu0
      %v567 = vpop.f32.mrb[0].mxu0
      %v568 = vadd.f32 %v480, %v567
      %v569 = vpop.f32.mrb[0].mxu0
      %570 = vmatprep.mubr.bf16.mxu0 0
      %571 = vmatmul.mubr.bf16.gmra.mrb[0].mxu0 %v230
      %v572 = vpop.f32.mrb[0].mxu0
      %v573 = vadd.f32 %v479, %v572
      %v574 = vpop.f32.mrb[0].mxu0
      %v575 = vpop.f32.mrb[0].mxu0
      %v576 = vpop.f32.mrb[0].mxu0
      %577 = vdwg.mxu0
      %v578 = vrot.slane %v460, 1
      %v579 = vrot.slane %v463, 1
      %v580 = vrot.slane %v468, 1
      %vm581 = vcmp.lt.s32.totalorder %v477, 7
      %v582 = vsel %vm581, %v579, %v580
      %v583 = vsel %vm581, %v578, %v579
      %v584 = vsel %vm581, %v580, %v578
      %v585 = vadd.f32 %v565, %v583
      %v586 = vadd.f32 %v568, %v582
      %v587 = vadd.f32 %v573, %v584
      %v588 = vld [vmem:[%s3] sm:$0x1]
      %v590 = vlaneseq
      %v591 = vshrl.u32 %v590, 7
      %v592 = vsub.s32 0, %v591
      %v593 = vrot.slane %v588, %v592
      %v595 = vadd.f32 %v585, %v593
      %v596 = vadd.f32 %v586, %v593
      %v597 = vadd.f32 %v587, %v593
      %v598 = vmax.f32 %v595, 0.0
      %v599 = vmax.f32 %v596, 0.0
      %v600 = vmax.f32 %v597, 0.0
      %v601 = vadd.s32 %v477, 8
      %v602 = vadd.s32 %v477, 16
      %vm603 = vcmp.lt.s32.totalorder %v477, 16
      %vm604 = vcmp.lt.s32.totalorder %v601, 16
      %vm605 = vcmp.lt.s32.totalorder %v602, 16
      %v606 = vsel %vm603, 1, 0
      %v607 = vsel %vm604, 1, 0
      %v608 = vsel %vm605, 1, 0
      %v609 = vcvt.s32.f32 %v606
      %v610 = vcvt.s32.f32 %v607
      %v611 = vcvt.s32.f32 %v608
      %v612 = vmul.f32 %v598, %v609
      %v613 = vmul.f32 %v599, %v610
      %v614 = vmul.f32 %v600, %v611
      %v615 = vpack.c.bf16 %v613, %v612
      %v616 = vpack.c.bf16 %v614, %v614
      %v617 = vld [vmem:[%s2] sm:$0xf]
      %v618 = vld [vmem:[%s2 + $0x4] sm:$0xf]
      %v619 = vld [vmem:[%s2 + $0x8] sm:$0xf]
      %v620 = vld [vmem:[%s2 + $0xc] sm:$0xf]
      %v621 = vld [vmem:[%s2 + $0x10] sm:$0xf]
      %v622 = vld [vmem:[%s2 + $0x14] sm:$0xf]
      %v623 = vld [vmem:[%s2 + $0x18] sm:$0xf]
      %v624 = vld [vmem:[%s2 + $0x1c] sm:$0xf]
      %v625 = vld [vmem:[%s2 + $0x20] sm:$0xf]
      %v626 = vld [vmem:[%s2 + $0x24] sm:$0xf]
      %v627 = vld [vmem:[%s2 + $0x28] sm:$0xf]
      %v628 = vld [vmem:[%s2 + $0x2c] sm:$0xf]
      %v629 = vld [vmem:[%s2 + $0x30] sm:$0xf]
      %v630 = vld [vmem:[%s2 + $0x34] sm:$0xf]
      %v631 = vld [vmem:[%s2 + $0x38] sm:$0xf]
      %v632 = vld [vmem:[%s2 + $0x3c] sm:$0xf]
      %v649 = vunpack.c.l.b16 %v617
      %v650 = vunpack.c.l.b16 %v618
      %v651 = vunpack.c.l.b16 %v619
      %v652 = vunpack.c.l.b16 %v620
      %v653 = vunpack.c.l.b16 %v621
      %v654 = vunpack.c.l.b16 %v622
      %v655 = vunpack.c.l.b16 %v623
      %v656 = vunpack.c.l.b16 %v624
      %v657 = vunpack.c.l.b16 %v625
      %v658 = vunpack.c.l.b16 %v626
      %v659 = vunpack.c.l.b16 %v627
      %v660 = vunpack.c.l.b16 %v628
      %v661 = vunpack.c.l.b16 %v629
      %v662 = vunpack.c.l.b16 %v630
      %v663 = vunpack.c.l.b16 %v631
      %v664 = vunpack.c.l.b16 %v632
      %v665 = vpack.c.b16 %v650, %v649
      %v666 = vpack.c.b16 %v652, %v651
      %v667 = vpack.c.b16 %v654, %v653
      %v668 = vpack.c.b16 %v656, %v655
      %v669 = vpack.c.b16 %v658, %v657
      %v670 = vpack.c.b16 %v660, %v659
      %v671 = vpack.c.b16 %v662, %v661
      %v672 = vpack.c.b16 %v664, %v663
      %681 = vmatprep.subr.bf16.mxu0 0
      %682 = vmatpush1.bf16.msra.mxu0 %v665
      %683 = vmatprep.subr.bf16.mxu0 0
      %684 = vmatpush1.bf16.msra.mxu0 %v666
      %685 = vmatprep.subr.bf16.mxu0 0
      %686 = vmatpush1.bf16.msra.mxu0 %v667
      %687 = vmatprep.subr.bf16.mxu0 0
      %688 = vmatpush1.bf16.msra.mxu0 %v668
      %689 = vmatprep.subr.bf16.mxu0 0
      %690 = vmatpush1.bf16.msra.mxu0 %v669
      %691 = vmatprep.subr.bf16.mxu0 0
      %692 = vmatpush1.bf16.msra.mxu0 %v670
      %693 = vmatprep.subr.bf16.mxu0 0
      %694 = vmatpush1.bf16.msra.mxu0 %v671
      %695 = vmatprep.subr.bf16.mxu0 0
      %696 = vmatpush1.bf16.msra.mxu0 %v672
      %697 = vmatprep.subr.bf16.mxu0 0
      %698 = vmatpush1.bf16.msra.mxu0 0
      %699 = vmatprep.subr.bf16.mxu0 0
      %700 = vmatpush1.bf16.msra.mxu0 0
      %701 = vmatprep.subr.bf16.mxu0 0
      %702 = vmatpush1.bf16.msra.mxu0 0
      %703 = vmatprep.subr.bf16.mxu0 0
      %704 = vmatpush1.bf16.msra.mxu0 0
      %705 = vmatprep.subr.bf16.mxu0 0
      %706 = vmatpush1.bf16.msra.mxu0 0
      %707 = vmatprep.subr.bf16.mxu0 0
      %708 = vmatpush1.bf16.msra.mxu0 0
      %709 = vmatprep.subr.bf16.mxu0 0
      %710 = vmatpush1.bf16.msra.mxu0 0
      %711 = vmatprep.subr.bf16.mxu0 0
      %712 = vmatpush1.bf16.msra.mxu0 0
      %713 = vmatprep.mubr.bf16.mxu0 0
      %714 = vmatmul.mubr.bf16.gmra.mrb[0].mxu0 %v615
      %v715 = vpop.f32.mrb[0].mxu0
      %v716 = vadd.f32 0.0, %v715
      %v717 = vpop.f32.mrb[0].mxu0
      %v718 = vpop.f32.mrb[0].mxu0
      %v719 = vadd.f32 0.0, %v718
      %v720 = vpop.f32.mrb[0].mxu0
      %721 = vmatprep.mubr.bf16.mxu0 0
      %722 = vmatmul.mubr.bf16.gmra.mrb[0].mxu0 %v616
      %v723 = vpop.f32.mrb[0].mxu0
      %v724 = vadd.f32 0.0, %v723
      %v725 = vpop.f32.mrb[0].mxu0
      %v726 = vpop.f32.mrb[0].mxu0
      %v727 = vpop.f32.mrb[0].mxu0
      %728 = vdwg.mxu0
      %s729 = scalar_lea.vmem %s2, 64
      %v730 = vld [vmem:[%s729] sm:$0xf]
      %v731 = vld [vmem:[%s729 + $0x4] sm:$0xf]
      %v732 = vld [vmem:[%s729 + $0x8] sm:$0xf]
      %v733 = vld [vmem:[%s729 + $0xc] sm:$0xf]
      %v734 = vld [vmem:[%s729 + $0x10] sm:$0xf]
      %v735 = vld [vmem:[%s729 + $0x14] sm:$0xf]
      %v736 = vld [vmem:[%s729 + $0x18] sm:$0xf]
      %v737 = vld [vmem:[%s729 + $0x1c] sm:$0xf]
      %v738 = vld [vmem:[%s729 + $0x20] sm:$0xf]
      %v739 = vld [vmem:[%s729 + $0x24] sm:$0xf]
      %v740 = vld [vmem:[%s729 + $0x28] sm:$0xf]
      %v741 = vld [vmem:[%s729 + $0x2c] sm:$0xf]
      %v742 = vld [vmem:[%s729 + $0x30] sm:$0xf]
      %v743 = vld [vmem:[%s729 + $0x34] sm:$0xf]
      %v744 = vld [vmem:[%s729 + $0x38] sm:$0xf]
      %v745 = vld [vmem:[%s729 + $0x3c] sm:$0xf]
      %s746 = scalar_lea.vmem %s2, 128
      %v747 = vld [vmem:[%s746] sm:$0xf]
      %v748 = vld [vmem:[%s746 + $0x4] sm:$0xf]
      %v749 = vld [vmem:[%s746 + $0x8] sm:$0xf]
      %v750 = vld [vmem:[%s746 + $0xc] sm:$0xf]
      %v751 = vld [vmem:[%s746 + $0x10] sm:$0xf]
      %v752 = vld [vmem:[%s746 + $0x14] sm:$0xf]
      %v753 = vld [vmem:[%s746 + $0x18] sm:$0xf]
      %v754 = vld [vmem:[%s746 + $0x1c] sm:$0xf]
      %v755 = vld [vmem:[%s746 + $0x20] sm:$0xf]
      %v756 = vld [vmem:[%s746 + $0x24] sm:$0xf]
      %v757 = vld [vmem:[%s746 + $0x28] sm:$0xf]
      %v758 = vld [vmem:[%s746 + $0x2c] sm:$0xf]
      %v759 = vld [vmem:[%s746 + $0x30] sm:$0xf]
      %v760 = vld [vmem:[%s746 + $0x34] sm:$0xf]
      %v761 = vld [vmem:[%s746 + $0x38] sm:$0xf]
      %v762 = vld [vmem:[%s746 + $0x3c] sm:$0xf]
      %v779 = vunpack.c.l.b16 %v747
      %v780 = vunpack.c.l.b16 %v748
      %v781 = vunpack.c.l.b16 %v749
      %v782 = vunpack.c.l.b16 %v750
      %v783 = vunpack.c.l.b16 %v751
      %v784 = vunpack.c.l.b16 %v752
      %v785 = vunpack.c.l.b16 %v753
      %v786 = vunpack.c.l.b16 %v754
      %v787 = vunpack.c.l.b16 %v755
      %v788 = vunpack.c.l.b16 %v756
      %v789 = vunpack.c.l.b16 %v757
      %v790 = vunpack.c.l.b16 %v758
      %v791 = vunpack.c.l.b16 %v759
      %v792 = vunpack.c.l.b16 %v760
      %v793 = vunpack.c.l.b16 %v761
      %v794 = vunpack.c.l.b16 %v762
      %v795 = vpack.c.b16 %v780, %v779
      %v796 = vpack.c.b16 %v782, %v781
      %v797 = vpack.c.b16 %v784, %v783
      %v798 = vpack.c.b16 %v786, %v785
      %v799 = vpack.c.b16 %v788, %v787
      %v800 = vpack.c.b16 %v790, %v789
      %v801 = vpack.c.b16 %v792, %v791
      %v802 = vpack.c.b16 %v794, %v793
      %811 = vmatprep.subr.bf16.mxu0 0
      %812 = vmatpush1.bf16.msra.mxu0 %v795
      %813 = vmatprep.subr.bf16.mxu0 0
      %814 = vmatpush1.bf16.msra.mxu0 %v796
      %815 = vmatprep.subr.bf16.mxu0 0
      %816 = vmatpush1.bf16.msra.mxu0 %v797
      %817 = vmatprep.subr.bf16.mxu0 0
      %818 = vmatpush1.bf16.msra.mxu0 %v798
      %819 = vmatprep.subr.bf16.mxu0 0
      %820 = vmatpush1.bf16.msra.mxu0 %v799
      %821 = vmatprep.subr.bf16.mxu0 0
      %822 = vmatpush1.bf16.msra.mxu0 %v800
      %823 = vmatprep.subr.bf16.mxu0 0
      %824 = vmatpush1.bf16.msra.mxu0 %v801
      %825 = vmatprep.subr.bf16.mxu0 0
      %826 = vmatpush1.bf16.msra.mxu0 %v802
      %827 = vmatprep.subr.bf16.mxu0 0
      %828 = vmatpush1.bf16.msra.mxu0 0
      %829 = vmatprep.subr.bf16.mxu0 0
      %830 = vmatpush1.bf16.msra.mxu0 0
      %831 = vmatprep.subr.bf16.mxu0 0
      %832 = vmatpush1.bf16.msra.mxu0 0
      %833 = vmatprep.subr.bf16.mxu0 0
      %834 = vmatpush1.bf16.msra.mxu0 0
      %835 = vmatprep.subr.bf16.mxu0 0
      %836 = vmatpush1.bf16.msra.mxu0 0
      %837 = vmatprep.subr.bf16.mxu0 0
      %838 = vmatpush1.bf16.msra.mxu0 0
      %839 = vmatprep.subr.bf16.mxu0 0
      %840 = vmatpush1.bf16.msra.mxu0 0
      %841 = vmatprep.subr.bf16.mxu0 0
      %842 = vmatpush1.bf16.msra.mxu0 0
      %843 = vmatprep.mubr.bf16.mxu0 0
      %844 = vmatmul.mubr.bf16.gmra.mrb[0].mxu0 %v615
      %v845 = vpop.f32.mrb[0].mxu0
      %v846 = vadd.f32 0.0, %v845
      %v847 = vpop.f32.mrb[0].mxu0
      %v848 = vpop.f32.mrb[0].mxu0
      %v849 = vadd.f32 0.0, %v848
      %v850 = vpop.f32.mrb[0].mxu0
      %851 = vmatprep.mubr.bf16.mxu0 0
      %852 = vmatmul.mubr.bf16.gmra.mrb[0].mxu0 %v616
      %v853 = vpop.f32.mrb[0].mxu0
      %v854 = vadd.f32 0.0, %v853
      %v855 = vpop.f32.mrb[0].mxu0
      %v856 = vpop.f32.mrb[0].mxu0
      %v857 = vpop.f32.mrb[0].mxu0
      %858 = vdwg.mxu0
      %v859 = vrot.slane %v716, 7
      %v860 = vrot.slane %v719, 7
      %v861 = vrot.slane %v724, 7
      %v862 = vsel %vm478, %v859, %v860
      %v863 = vsel %vm478, %v861, %v859
      %v880 = vunpack.c.l.b16 %v730
      %v881 = vunpack.c.l.b16 %v731
      %v882 = vunpack.c.l.b16 %v732
      %v883 = vunpack.c.l.b16 %v733
      %v884 = vunpack.c.l.b16 %v734
      %v885 = vunpack.c.l.b16 %v735
      %v886 = vunpack.c.l.b16 %v736
      %v887 = vunpack.c.l.b16 %v737
      %v888 = vunpack.c.l.b16 %v738
      %v889 = vunpack.c.l.b16 %v739
      %v890 = vunpack.c.l.b16 %v740
      %v891 = vunpack.c.l.b16 %v741
      %v892 = vunpack.c.l.b16 %v742
      %v893 = vunpack.c.l.b16 %v743
      %v894 = vunpack.c.l.b16 %v744
      %v895 = vunpack.c.l.b16 %v745
      %v896 = vpack.c.b16 %v881, %v880
      %v897 = vpack.c.b16 %v883, %v882
      %v898 = vpack.c.b16 %v885, %v884
      %v899 = vpack.c.b16 %v887, %v886
      %v900 = vpack.c.b16 %v889, %v888
      %v901 = vpack.c.b16 %v891, %v890
      %v902 = vpack.c.b16 %v893, %v892
      %v903 = vpack.c.b16 %v895, %v894
      %912 = vmatprep.subr.bf16.mxu0 0
      %913 = vmatpush1.bf16.msra.mxu0 %v896
      %914 = vmatprep.subr.bf16.mxu0 0
      %915 = vmatpush1.bf16.msra.mxu0 %v897
      %916 = vmatprep.subr.bf16.mxu0 0
      %917 = vmatpush1.bf16.msra.mxu0 %v898
      %918 = vmatprep.subr.bf16.mxu0 0
      %919 = vmatpush1.bf16.msra.mxu0 %v899
      %920 = vmatprep.subr.bf16.mxu0 0
      %921 = vmatpush1.bf16.msra.mxu0 %v900
      %922 = vmatprep.subr.bf16.mxu0 0
      %923 = vmatpush1.bf16.msra.mxu0 %v901
      %924 = vmatprep.subr.bf16.mxu0 0
      %925 = vmatpush1.bf16.msra.mxu0 %v902
      %926 = vmatprep.subr.bf16.mxu0 0
      %927 = vmatpush1.bf16.msra.mxu0 %v903
      %928 = vmatprep.subr.bf16.mxu0 0
      %929 = vmatpush1.bf16.msra.mxu0 0
      %930 = vmatprep.subr.bf16.mxu0 0
      %931 = vmatpush1.bf16.msra.mxu0 0
      %932 = vmatprep.subr.bf16.mxu0 0
      %933 = vmatpush1.bf16.msra.mxu0 0
      %934 = vmatprep.subr.bf16.mxu0 0
      %935 = vmatpush1.bf16.msra.mxu0 0
      %936 = vmatprep.subr.bf16.mxu0 0
      %937 = vmatpush1.bf16.msra.mxu0 0
      %938 = vmatprep.subr.bf16.mxu0 0
      %939 = vmatpush1.bf16.msra.mxu0 0
      %940 = vmatprep.subr.bf16.mxu0 0
      %941 = vmatpush1.bf16.msra.mxu0 0
      %942 = vmatprep.subr.bf16.mxu0 0
      %943 = vmatpush1.bf16.msra.mxu0 0
      %944 = vmatprep.mubr.bf16.mxu0 0
      %945 = vmatmul.mubr.bf16.gmra.mrb[0].mxu0 %v615
      %v946 = vpop.f32.mrb[0].mxu0
      %v947 = vadd.f32 %v863, %v946
      %v948 = vpop.f32.mrb[0].mxu0
      %v949 = vpop.f32.mrb[0].mxu0
      %v950 = vadd.f32 %v862, %v949
      %v951 = vpop.f32.mrb[0].mxu0
      %952 = vmatprep.mubr.bf16.mxu0 0
      %953 = vmatmul.mubr.bf16.gmra.mrb[0].mxu0 %v616
      %v954 = vpop.f32.mrb[0].mxu0
      %v955 = vpop.f32.mrb[0].mxu0
      %v956 = vpop.f32.mrb[0].mxu0
      %v957 = vpop.f32.mrb[0].mxu0
      %958 = vdwg.mxu0
      %v959 = vrot.slane %v846, 1
      %v960 = vrot.slane %v849, 1
      %v961 = vrot.slane %v854, 1
      %v962 = vsel %vm581, %v960, %v961
      %v963 = vsel %vm581, %v959, %v960
      %v964 = vadd.f32 %v947, %v963
      %v965 = vadd.f32 %v950, %v962
      %v966 = vld [vmem:[%s4] sm:$0x1]
      %v968 = vlaneseq
      %v969 = vshrl.u32 %v968, 7
      %v970 = vsub.s32 0, %v969
      %v971 = vrot.slane %v966, %v970
      %v973 = vadd.f32 %v964, %v971
      %v974 = vadd.f32 %v965, %v971
      %v975 = vadd.f32 %v973, %v226
      %v976 = vadd.f32 %v974, %v227
      %v977 = vmax.f32 %v975, 0.0
      %v978 = vmax.f32 %v976, 0.0
      %979 = vst [vmem:[%s224] sm:$0xff] %v977
      %980 = vst [vmem:[%s224 + $0x8] sm:$0xff] %v978
      %p981 = scmp.lt.s32.totalorder %s16, 1
      %s982 = scalar_select %p981, %s16, 1
      %s983 = smul.addr %s982, 2
      %s984 = smul.addr %s983, 8
      %s985 = scalar_lea.vmem %s5, %s984
      // Predicated region
      $region41: #{basic_block_forward.1} parent=39 // pred_check
        %p986 = pneg %p144
      $region42: #{basic_block_forward.1} parent=39 // pred_check_branch
        %988 = sbr.rel (%p986) target = $region44
      $region43: #{basic_block_forward.1} parent=39 // pred_region
        _
      $region44: #{basic_block_forward.1} parent=39 // pred_fallthru
        _
    $region40: #{basic_block_forward.1} parent=5 // pred_fallthru
      _
    %p989 = scmp.le.s32.totalorder 2, %s11
    // Predicated region
    $region45: #{basic_block_forward.1} parent=5 // pred_check
      %p990 = pneg %p989
    $region46: #{basic_block_forward.1} parent=5 // pred_check_branch
      %992 = sbr.rel (%p990) target = $region48
    $region47: #{basic_block_forward.1} parent=5 // pred_region
      %s993 = ssub.s32 %s11, 2
      // Predicated region
      $region49: #{basic_block_forward.1} parent=47 // pred_check
        %p994 = pneg %p150
      $region50: #{basic_block_forward.1} parent=47 // pred_check_branch
        %996 = sbr.rel (%p994) target = $region52
      $region51: #{basic_block_forward.1} parent=47 // pred_region
        %p997 = scmp.lt.s32.totalorder %s17, 1
        %s998 = scalar_select %p997, %s17, 1
        %s999 = smul.addr %s998, 2
        %s1000 = smul.addr %s999, 8
        %s1001 = scalar_lea.vmem %s5, %s1000
      $region52: #{basic_block_forward.1} parent=47 // pred_fallthru
        _
    $region48: #{basic_block_forward.1} parent=5 // pred_fallthru
      _
  $region6: #{basic_block_forward.1} parent=0 // loop_footer
    %s15 = sadd.s32 1, %s11
  $region7: #{basic_block_forward.1} parent=0 // loop_footer_branch
    %10 = sbr.rel target = $region3
  $region8: #{basic_block_forward.1} parent=0 // loop_exit
    _

</llo_original>
